<compile_context>
chip_gen: v6e
topology: v6e:2x2x1
jax: 0.10.0
libtpu: 0.0.40
codegen_flags: <defaults>
</compile_context>

<pallas_src>
import functools
import math

import jax
import jax.numpy as jnp
from jax.experimental import pallas as pl
from jax.experimental.pallas import tpu as pltpu


# --------------------------------------------------------------------------- #
# Kernel
# --------------------------------------------------------------------------- #
def _unit_gcn_kernel(x_ref, a_ref, w_ref, shift_ref, o_ref, *,
                     num_subset, out_c, identity_residual):
    """One grid step on a channels-first slab.

    x_ref:     (1, C, R)        bf16 input slab, R = tile_t * V_pad
    a_ref:     (K, R, R)        bf16 block-diagonal normalized adjacency I (x) A_k
    w_ref:     ((K[+1])*O, C)   bf16 stacked BN-scaled 1x1-conv weights
                                (last O rows = residual 'down' conv if present)
    shift_ref: (O, 1)           f32 folded conv biases + BN shifts
    o_ref:     (1, O, R)        output slab (input dtype)
    """
    x_cf = x_ref[0]                                                  # (C, R) bf16

    # All 1x1 convs (and the optional down-conv) as ONE stacked bf16 MXU matmul.
    z = jnp.dot(w_ref[...], x_cf, preferred_element_type=jnp.float32)  # ((K[+1])*O, R) f32

    # Graph aggregation: per subset, one flat (O, R) @ (R, R) bf16 matmul against
    # the block-diagonal adjacency (acts frame-wise on the V axis).
    # NOTE: slice starts are k*out_c; out_c is a multiple of 8 in practice so the
    # slices stay sublane-aligned (no hidden relayout copies).
    zb = z[: num_subset * out_c, :].astype(jnp.bfloat16)
    acc = jnp.dot(zb[0:out_c, :], a_ref[0], preferred_element_type=jnp.float32)
    for k in range(1, num_subset):
        acc = acc + jnp.dot(zb[k * out_c:(k + 1) * out_c, :], a_ref[k],
                            preferred_element_type=jnp.float32)

    # Residual branch.
    if identity_residual:
        acc = acc + x_cf.astype(jnp.float32)                         # C == O here
    else:
        acc = acc + z[num_subset * out_c:(num_subset + 1) * out_c, :]

    # Folded biases / BN shifts, then ReLU.
    acc = acc + shift_ref[...]
    o_ref[0] = jnp.maximum(acc, 0.0).astype(o_ref.dtype)


# --------------------------------------------------------------------------- #
# Tiling helpers
# --------------------------------------------------------------------------- #
def _round_up(x, m):
    return ((x + m - 1) // m) * m


def _default_max_rows():
    """R = 256 fills the 256-wide MXU (v6e/v7x); on 128-wide-MXU generations
    (v2-v5) R = 128 halves the block-diagonal aggregation's wasted passes."""
    try:
        kind = jax.devices()[0].device_kind.lower()
    except Exception:
        return 256
    if any(g in kind for g in ("v2", "v3", "v4", "v5")):
        return 128
    return 256


def _choose_tiling(t, v, max_rows):
    """Pick (tile_t, v_pad) such that R = tile_t * v_pad is either a multiple of
    128 (lane-dense) or spans the whole (padded) flat axis, with R <= max_rows
    whenever V allows it.  V / T are zero-padded by the caller, so this never
    falls back to R = T*V (the old VMEM landmine for V=25-style skeletons)."""
    r_max = max(128, (max_rows // 128) * 128)
    if v > r_max:
        # V alone exceeds the row budget: one frame per step, pad V to a lane
        # multiple.  A_big degenerates to padded A itself (no kron inflation).
        return 1, _round_up(v, 128)
    v_pad = min(d for d in range(v, r_max + 1) if r_max % d == 0)
    tile_t = r_max // v_pad
    if tile_t > t:
        # Don't process more padded frames than the clip has; the block then
        # spans the whole (un-padded) flat T*V_pad axis, which is always legal.
        tile_t = t
    return tile_t, v_pad


# --------------------------------------------------------------------------- #
# Host wrapper
# --------------------------------------------------------------------------- #
def unit_gcn_forward(x_nctv, params, eps=1e-5, max_rows=None,
                     compute_dtype=jnp.bfloat16):
    """x_nctv: (N, C, T, V) float32.  Returns (N, O, T, V).  Eval-mode BN."""
    n, c, t, v = x_nctv.shape
    k, _, o = params["w"].shape                       # w: (K, C, O)
    identity_residual = "wd" not in params
    if identity_residual:
        assert c == o, "identity residual requires in_c == out_c"

    if max_rows is None:
        max_rows = _default_max_rows()
    tile_t, v_pad = _choose_tiling(t, v, max_rows)
    t_pad = _round_up(t, tile_t)
    r = tile_t * v_pad
    out_dtype = x_nctv.dtype

    # ---- host-side (grid-invariant) preprocessing, hoisted out of the kernel ----
    # Adaptive adjacency: A = PA * mask, L2-normalized per column of each (V, V)
    # slice (torch.norm(A, 2, dim=1, keepdim=True)).
    a = params["PA"] * params["mask"]
    a = a / (jnp.sqrt(jnp.sum(a * a, axis=1, keepdims=True)) + 1e-4)   # (K, V, V)
    if v_pad != v:
        a = jnp.pad(a, ((0, 0), (0, v_pad - v), (0, v_pad - v)))       # zero pads
    # Block-diagonal form I_{tile_t} (x) A_k -> one flat matmul per subset.
    eye = jnp.eye(tile_t, dtype=jnp.float32)
    a_big = jnp.einsum("ts,kuv->ktusv", eye, a).reshape(k, r, r)
    a_big = a_big.astype(compute_dtype)                                # (K, R, R)

    # Fold eval-mode BN and conv biases into stacked weights + one shift vector.
    bn_scale = params["bn_gamma"] / jnp.sqrt(params["bn_var"] + eps)
    bn_shift = params["bn_beta"] - params["bn_mean"] * bn_scale
    w_mix = params["w"] * bn_scale[None, None, :]                      # (K, C, O)
    w_mix_t = jnp.transpose(w_mix, (0, 2, 1)).reshape(k * o, c)        # (K*O, C)
    shift = bn_shift + bn_scale * jnp.sum(params["b"], axis=0)
    if identity_residual:
        w_all = w_mix_t
    else:
        bnd_scale = params["bnd_gamma"] / jnp.sqrt(params["bnd_var"] + eps)
        bnd_shift = params["bnd_beta"] - params["bnd_mean"] * bnd_scale
        wd_t = (params["wd"] * bnd_scale[None, :]).T                   # (O, C)
        w_all = jnp.concatenate([w_mix_t, wd_t], axis=0)               # ((K+1)*O, C)
        shift = shift + bnd_shift + bnd_scale * params["bd"]
    w_all = w_all.astype(compute_dtype)
    shift = shift.reshape(o, 1).astype(jnp.float32)

    # Pad V / T with zeros (free correctness: padded rows/cols of A are zero and
    # padded frames are cropped below), then flatten -- no host transpose.
    if v_pad != v or t_pad != t:
        x_nctv = jnp.pad(x_nctv, ((0, 0), (0, 0), (0, t_pad - t), (0, v_pad - v)))
    x_flat = x_nctv.reshape(n, c, t_pad * v_pad).astype(compute_dtype)

    # Advisory cost estimate so XLA schedules around the custom call.
    n_rows = n * t_pad * v_pad
    conv_rows = (k + (0 if identity_residual else 1)) * o
    flops = 2 * n_rows * (conv_rows * c + k * o * r)
    bytes_accessed = (x_flat.size * x_flat.dtype.itemsize
                      + n * o * t_pad * v_pad * jnp.dtype(out_dtype).itemsize
                      + a_big.size * a_big.dtype.itemsize
                      + w_all.size * w_all.dtype.itemsize)

    out_flat = pl.pallas_call(
        functools.partial(_unit_gcn_kernel, num_subset=k, out_c=o,
                          identity_residual=identity_residual),
        out_shape=jax.ShapeDtypeStruct((n, o, t_pad * v_pad), out_dtype),
        grid_spec=pltpu.PrefetchScalarGridSpec(
            num_scalar_prefetch=0,
            grid=(n, t_pad // tile_t),
            in_specs=[
                pl.BlockSpec((1, c, r), lambda ni, ti: (ni, 0, ti)),
                pl.BlockSpec((k, r, r), lambda ni, ti: (0, 0, 0)),
                pl.BlockSpec(w_all.shape, lambda ni, ti: (0, 0)),
                pl.BlockSpec((o, 1), lambda ni, ti: (0, 0)),
            ],
            out_specs=pl.BlockSpec((1, o, r), lambda ni, ti: (ni, 0, ti)),
        ),
        compiler_params=pltpu.CompilerParams(
            dimension_semantics=("parallel", "parallel")),
        cost_estimate=pl.CostEstimate(flops=int(flops), transcendentals=0,
                                      bytes_accessed=int(bytes_accessed)),
    )(x_flat, a_big, w_all, shift)

    out = out_flat.reshape(n, o, t_pad, v_pad)
    return out[:, :, :t, :v]


# --------------------------------------------------------------------------- #
# Pure-JAX reference (matches the PyTorch forward, eval-mode BN)
# --------------------------------------------------------------------------- #
def unit_gcn_reference(x, params, eps=1e-5):
    n, c, t, v = x.shape
    k, _, o = params["w"].shape
    a = params["PA"] * params["mask"]
    a = a / (jnp.sqrt(jnp.sum(a * a, axis=1, keepdims=True)) + 1e-4)
    y = jnp.zeros((n, o, t, v), jnp.float32)
    x2 = x.reshape(n, c * t, v)
    for i in range(k):
        xa = (x2 @ a[i]).reshape(n, c, t, v)
        z = jnp.einsum("nctv,co->notv", xa, params["w"][i]) \
            + params["b"][i][None, :, None, None]
        y = y + z
    bn_scale = params["bn_gamma"] / jnp.sqrt(params["bn_var"] + eps)
    bn_shift = params["bn_beta"] - params["bn_mean"] * bn_scale
    y = y * bn_scale[None, :, None, None] + bn_shift[None, :, None, None]
    if "wd" in params:
        d = jnp.einsum("nctv,co->notv", x, params["wd"]) \
            + params["bd"][None, :, None, None]
        bnd_scale = params["bnd_gamma"] / jnp.sqrt(params["bnd_var"] + eps)
        bnd_shift = params["bnd_beta"] - params["bnd_mean"] * bnd_scale
        d = d * bnd_scale[None, :, None, None] + bnd_shift[None, :, None, None]
    else:
        d = x
    return jnp.maximum(y + d, 0.0)


def make_params(key, in_c, out_c, num_subset, v):
    ks = jax.random.split(key, 13)
    std = math.sqrt(2.0 / (out_c * num_subset))
    p = {
        "PA":   jax.random.normal(ks[0], (num_subset, v, v), jnp.float32) * 0.5,
        "mask": jax.random.normal(ks[1], (num_subset, v, v), jnp.float32) * 0.5 + 1.0,
        "w":    jax.random.normal(ks[2], (num_subset, in_c, out_c), jnp.float32) * std,
        "b":    jax.random.normal(ks[3], (num_subset, out_c), jnp.float32) * 0.1,
        "bn_gamma": 1.0 + 0.1 * jax.random.normal(ks[4], (out_c,), jnp.float32),
        "bn_beta":  0.1 * jax.random.normal(ks[5], (out_c,), jnp.float32),
        "bn_mean":  0.1 * jax.random.normal(ks[6], (out_c,), jnp.float32),
        "bn_var":   1.0 + 0.1 * jnp.abs(jax.random.normal(ks[7], (out_c,), jnp.float32)),
    }
    if in_c != out_c:   # conv + BN 'down' branch; identity residual otherwise
        p["wd"] = jax.random.normal(ks[8], (in_c, out_c), jnp.float32) * math.sqrt(2.0 / out_c)
        p["bd"] = 0.05 * jax.random.normal(ks[9], (out_c,), jnp.float32)
        p["bnd_gamma"] = 1.0 + 0.1 * jax.random.normal(ks[10], (out_c,), jnp.float32)
        p["bnd_beta"] = 0.1 * jax.random.normal(ks[11], (out_c,), jnp.float32)
        p["bnd_mean"] = 0.1 * jax.random.normal(ks[12], (out_c,), jnp.float32)
        p["bnd_var"] = jnp.ones((out_c,), jnp.float32)
    return p


def _check(name, out, ref, atol=4e-2, rtol=4e-2):
    err = jnp.max(jnp.abs(out - ref))
    assert jnp.allclose(out, ref, atol=atol, rtol=rtol), \
        f"{name} max abs err = {err}"


if __name__ == "__main__":
    key = jax.random.PRNGKey(0)
    k_x1, k_p1, k_x2, k_p2, k_x3, k_p3 = jax.random.split(key, 6)

    # Case 1: in_c != out_c (conv + BN residual branch fused into the stacked matmul).
    N, C_IN, C_OUT, T, V, K = 2, 4, 8, 16, 16, 3
    x = jax.random.normal(k_x1, (N, C_IN, T, V), jnp.float32)
    params = make_params(k_p1, C_IN, C_OUT, K, V)
    out = jax.block_until_ready(unit_gcn_forward(x, params))
    assert out.shape == (N, C_OUT, T, V)
    _check("case1", out, unit_gcn_reference(x, params))

    # Case 2: in_c == out_c (identity residual; down-conv matmul skipped).
    x2 = jax.random.normal(k_x2, (N, C_OUT, T, V), jnp.float32)
    params2 = make_params(k_p2, C_OUT, C_OUT, K, V)
    out2 = jax.block_until_ready(unit_gcn_forward(x2, params2))
    assert out2.shape == (N, C_OUT, T, V)
    _check("case2", out2, unit_gcn_reference(x2, params2))

    # Case 3: skeleton-style V=25, T not a multiple of the tile -> exercises the
    # V/T zero-padding path that replaces the old R = T*V fallback.
    N3, C3_IN, C3_OUT, T3, V3 = 2, 4, 8, 12, 25
    x3 = jax.random.normal(k_x3, (N3, C3_IN, T3, V3), jnp.float32)
    params3 = make_params(k_p3, C3_IN, C3_OUT, K, V3)
    out3 = jax.block_until_ready(unit_gcn_forward(x3, params3))
    assert out3.shape == (N3, C3_OUT, T3, V3)
    _check("case3", out3, unit_gcn_reference(x3, params3))

    print("KERNEL_OK")
</pallas_src>

<mosaic_0001>
module attributes {stable_mosaic.version = 11 : i64} {
  func.func @_unit_gcn_kernel(%arg0: i32, %arg1: i32, %arg2: memref<1x4x256xbf16, #tpu.memory_space<vmem>>, %arg3: memref<3x256x256xbf16, #tpu.memory_space<vmem>>, %arg4: memref<32x4xbf16, #tpu.memory_space<vmem>>, %arg5: memref<8x1xf32, #tpu.memory_space<vmem>>, %arg6: memref<1x8x256xf32, #tpu.memory_space<vmem>>) attributes {dimension_semantics = [#tpu.dimension_semantics<parallel>, #tpu.dimension_semantics<parallel>], iteration_bounds = array<i64: 2, 1>, scalar_prefetch = 0 : i64, scratch_operands = 0 : i64, tpu.core_type = #tpu.core_type<tc>, window_params = [{transform_indices = @transform_0, window_bounds = array<i64: 1, 4, 256>}, {pipeline_mode = #tpu.pipeline_mode<synchronous>, transform_indices = @transform_1, window_bounds = array<i64: 3, 256, 256>}, {pipeline_mode = #tpu.pipeline_mode<synchronous>, transform_indices = @transform_2, window_bounds = array<i64: 32, 4>}, {pipeline_mode = #tpu.pipeline_mode<synchronous>, transform_indices = @transform_3, window_bounds = array<i64: 8, 1>}, {transform_indices = @transform_4, window_bounds = array<i64: 1, 8, 256>}]} {
    %c0 = arith.constant 0 : index
    %c0_0 = arith.constant 0 : index
    %c0_1 = arith.constant 0 : index
    %0 = vector.load %arg2[%c0, %c0_0, %c0_1] : memref<1x4x256xbf16, #tpu.memory_space<vmem>>, vector<1x4x256xbf16>
    %1 = vector.shape_cast %0 : vector<1x4x256xbf16> to vector<4x256xbf16>
    %c0_2 = arith.constant 0 : index
    %c0_3 = arith.constant 0 : index
    %2 = vector.load %arg4[%c0_2, %c0_3] : memref<32x4xbf16, #tpu.memory_space<vmem>>, vector<32x4xbf16>
    %cst = arith.constant dense<0.000000e+00> : vector<32x256xf32>
    %3 = tpu.matmul %2, %1, %cst {dimension_numbers = #tpu.dot_dimension_numbers<[1], [0], [0], [1], [0, 0, 1, 1], [], []>} : vector<32x4xbf16>, vector<4x256xbf16>, vector<32x256xf32> -> vector<32x256xf32>
    %4 = vector.extract_strided_slice %3 {offsets = [0, 0], sizes = [24, 256], strides = [1, 1]} : vector<32x256xf32> to vector<24x256xf32>
    %5 = arith.truncf %4 : vector<24x256xf32> to vector<24x256xbf16>
    %6 = vector.extract_strided_slice %5 {offsets = [0, 0], sizes = [8, 256], strides = [1, 1]} : vector<24x256xbf16> to vector<8x256xbf16>
    %c0_4 = arith.constant 0 : index
    %c0_5 = arith.constant 0 : index
    %c0_6 = arith.constant 0 : index
    %7 = vector.load %arg3[%c0_4, %c0_5, %c0_6] : memref<3x256x256xbf16, #tpu.memory_space<vmem>>, vector<1x256x256xbf16>
    %8 = vector.shape_cast %7 : vector<1x256x256xbf16> to vector<256x256xbf16>
    %cst_7 = arith.constant dense<0.000000e+00> : vector<8x256xf32>
    %9 = tpu.matmul %6, %8, %cst_7 {dimension_numbers = #tpu.dot_dimension_numbers<[1], [0], [0], [1], [0, 0, 1, 1], [], []>} : vector<8x256xbf16>, vector<256x256xbf16>, vector<8x256xf32> -> vector<8x256xf32>
    %10 = vector.extract_strided_slice %5 {offsets = [8, 0], sizes = [8, 256], strides = [1, 1]} : vector<24x256xbf16> to vector<8x256xbf16>
    %c1 = arith.constant 1 : index
    %c0_8 = arith.constant 0 : index
    %c0_9 = arith.constant 0 : index
    %11 = vector.load %arg3[%c1, %c0_8, %c0_9] : memref<3x256x256xbf16, #tpu.memory_space<vmem>>, vector<1x256x256xbf16>
    %12 = vector.shape_cast %11 : vector<1x256x256xbf16> to vector<256x256xbf16>
    %cst_10 = arith.constant dense<0.000000e+00> : vector<8x256xf32>
    %13 = tpu.matmul %10, %12, %cst_10 {dimension_numbers = #tpu.dot_dimension_numbers<[1], [0], [0], [1], [0, 0, 1, 1], [], []>} : vector<8x256xbf16>, vector<256x256xbf16>, vector<8x256xf32> -> vector<8x256xf32>
    %14 = arith.addf %9, %13 : vector<8x256xf32>
    %15 = vector.extract_strided_slice %5 {offsets = [16, 0], sizes = [8, 256], strides = [1, 1]} : vector<24x256xbf16> to vector<8x256xbf16>
    %c2 = arith.constant 2 : index
    %c0_11 = arith.constant 0 : index
    %c0_12 = arith.constant 0 : index
    %16 = vector.load %arg3[%c2, %c0_11, %c0_12] : memref<3x256x256xbf16, #tpu.memory_space<vmem>>, vector<1x256x256xbf16>
    %17 = vector.shape_cast %16 : vector<1x256x256xbf16> to vector<256x256xbf16>
    %cst_13 = arith.constant dense<0.000000e+00> : vector<8x256xf32>
    %18 = tpu.matmul %15, %17, %cst_13 {dimension_numbers = #tpu.dot_dimension_numbers<[1], [0], [0], [1], [0, 0, 1, 1], [], []>} : vector<8x256xbf16>, vector<256x256xbf16>, vector<8x256xf32> -> vector<8x256xf32>
    %19 = arith.addf %14, %18 : vector<8x256xf32>
    %20 = vector.extract_strided_slice %3 {offsets = [24, 0], sizes = [8, 256], strides = [1, 1]} : vector<32x256xf32> to vector<8x256xf32>
    %21 = arith.addf %19, %20 : vector<8x256xf32>
    %c0_14 = arith.constant 0 : index
    %c0_15 = arith.constant 0 : index
    %22 = vector.load %arg5[%c0_14, %c0_15] : memref<8x1xf32, #tpu.memory_space<vmem>>, vector<8x1xf32>
    %23 = vector.broadcast %22 : vector<8x1xf32> to vector<8x256xf32>
    %24 = arith.addf %21, %23 : vector<8x256xf32>
    %cst_16 = arith.constant 0.000000e+00 : f32
    %25 = vector.broadcast %cst_16 : f32 to vector<8x256xf32>
    %26 = arith.maximumf %24, %25 : vector<8x256xf32>
    %c0_17 = arith.constant 0 : index
    %c0_18 = arith.constant 0 : index
    %c0_19 = arith.constant 0 : index
    %27 = vector.load %arg6[%c0_17, %c0_18, %c0_19] : memref<1x8x256xf32, #tpu.memory_space<vmem>>, vector<1x8x256xf32>
    %28 = vector.shape_cast %27 : vector<1x8x256xf32> to vector<8x256xf32>
    %29 = vector.shape_cast %26 : vector<8x256xf32> to vector<1x8x256xf32>
    tpu.vector_store %arg6[%c0_17, %c0_18, %c0_19], %29 {strides = array<i32>} : memref<1x8x256xf32, #tpu.memory_space<vmem>>, vector<1x8x256xf32>,
    return
  }
  func.func @transform_0(%arg0: i32, %arg1: i32) -> (i32, i32, i32) {
    %c0_i32 = arith.constant 0 : i32
    %c0_i32_0 = arith.constant 0 : i32
    return %arg0, %c0_i32, %arg1 : i32, i32, i32
  }
  func.func @transform_1(%arg0: i32, %arg1: i32) -> (i32, i32, i32) {
    %c0_i32 = arith.constant 0 : i32
    %c0_i32_0 = arith.constant 0 : i32
    %c0_i32_1 = arith.constant 0 : i32
    %c0_i32_2 = arith.constant 0 : i32
    return %c0_i32, %c0_i32_0, %c0_i32_1 : i32, i32, i32
  }
  func.func @transform_2(%arg0: i32, %arg1: i32) -> (i32, i32) {
    %c0_i32 = arith.constant 0 : i32
    %c0_i32_0 = arith.constant 0 : i32
    %c0_i32_1 = arith.constant 0 : i32
    return %c0_i32, %c0_i32_0 : i32, i32
  }
  func.func @transform_3(%arg0: i32, %arg1: i32) -> (i32, i32) {
    %c0_i32 = arith.constant 0 : i32
    %c0_i32_0 = arith.constant 0 : i32
    %c0_i32_1 = arith.constant 0 : i32
    return %c0_i32, %c0_i32_0 : i32, i32
  }
  func.func @transform_4(%arg0: i32, %arg1: i32) -> (i32, i32, i32) {
    %c0_i32 = arith.constant 0 : i32
    %c0_i32_0 = arith.constant 0 : i32
    return %arg0, %c0_i32, %arg1 : i32, i32, i32
  }
}

</mosaic_0001>

<llo_original>
// kernel: tpu_custom_call.1
$region0: #{tpu_custom_call.1}
  #allocation0 [shape = 'u32[]', space=smem, size = 0x4, offset = 0x4, fixed_abs, tag = 'smem constant byte address 0x4 - core index']
  #allocation1 [shape = 'u32[144,128]{1,0:T(1,128)}', space=vmem, size = 0x12000, scoped, tag = 'internal scratch']
  %s0 = inlined_call_operand.vmem [shape: bf16[2,4,256], index: 0, kind: input, shape index: {}]
  %s1 = inlined_call_operand.hbm [shape: bf16[3,256,256], index: 1, kind: input, shape index: {}]
  %s2 = inlined_call_operand.vmem [shape: bf16[32,4], index: 2, kind: input, shape index: {}]
  %s3 = inlined_call_operand.vmem [shape: f32[8,1], index: 3, kind: input, shape index: {}]
  %s4 = inlined_call_operand.hbm [shape: f32[2,8,256], index: 4, kind: output, shape index: {}]
  %s5 = sld [smem:[#allocation0]]
  $region53: #{tpu_custom_call.1} parent=0
    _
  %s7 = ssub.s32 1, %s5
  %s8 = scalar_select 0, %s7, %s5
  $region1: #{tpu_custom_call.1} parent=0
    #allocation2 [shape = 'u8[393216]{0}', space=vmem, size = 0x60000, scoped, tag = 'input window, operand 1, single buffered']
    #allocation3 [shape = 's32[2]{0}', space=sflag, size = 0x8, scoped, tag = 'scoped memory for tpu_custom_call.1']
    #allocation4 [shape = 's32[2]{0}', space=sflag, size = 0x8, scoped, tag = 'scoped memory for tpu_custom_call.1']
    #allocation5 [shape = 'u8[16384]{0}', space=vmem, size = 0x4000, scoped, tag = 'output window, operand 0']
    %9 = vsyncpa [#allocation3], 0
    %10 = vsyncpa [#allocation4], 0
    %s11 = scalar_lea.sflag [#allocation4], 1
    %12 = vsyncpa %s11, 0
    loop: start=0, step=1, limit=4
    $region2: #{tpu_custom_call.1} parent=1 // loop_pre_header
      _
    $region3: #{tpu_custom_call.1} parent=1 // loop_header
      %s14 = sphi 0, %s18
      %p15 = scmp.ge.s32.totalorder %s14, 4
      %s21 = sphi 0, %s33
      %s22 = sphi 0, %s29
      %s23 = sphi 0, %s21
      %s24 = sphi 0, %s22
      %s25 = sphi 0, %s23
      %s26 = sphi 0, %s24
      %s38 = sphi 0, %s40
      %s41 = sphi 0, %s38
      %s42 = sphi 0, %s41
      %s58 = sphi 0, %s42
      %s62 = sphi 0, %s62
      %s64 = sphi 0, %s62
      %s65 = sphi 0, %s64
      %s79 = sphi 0, %s65
      %s83 = sphi 0, %s83
      %s85 = sphi 0, %s83
      %s86 = sphi 0, %s85
      %s100 = sphi 0, %s86
      %s104 = sphi 0, %s104
      %s106 = sphi 0, %s104
      %s107 = sphi 0, %s106
      %s121 = sphi 0, %s107
      %s129 = sphi 0, %s131
      %s132 = sphi 0, %s129
      %s133 = sphi 0, %s132
      %s149 = sphi 0, %s133
    $region4: #{tpu_custom_call.1} parent=1 // loop_header_branch
      %17 = sbr.rel (%p15) target = $region8
    $region5: #{tpu_custom_call.1} parent=1 // loop_body
      %s19 = ssub.s32 %s14, 1
      %s20 = ssub.s32 %s14, 2
      %s27 = sadd.s32 1, %s22
      %p28 = scmp.ge.s32.totalorder %s27, 1
      %s29 = scalar_select %p28, 0, %s27
      %s30 = sadd.s32 1, %s21
      %s31 = scalar_select %p28, %s30, %s21
      %p32 = scmp.ge.s32.totalorder %s31, 2
      %s33 = scalar_select %p32, 0, %s31
      %s34 = ssub.s32 %s21, %s33
      %s35 = ssub.s32 %s22, %s29
      %s36 = sor.u32 %s34, %s35
      %p37 = scmp.eq.s32.totalorder %s36, 0
      %s39 = sadd.s32 %s38, 1
      %s40 = scalar_select %p37, %s38, %s39
      %p43 = pneg %p37
      %p44 = scmp.eq.s32.totalorder %s14, 1
      %p45 = por %p43, %p44
      %p46 = scmp.ne.s32.totalorder %s38, %s41
      %p47 = scmp.eq.s32.totalorder %s14, 0
      %p48 = por %p46, %p47
      %p49 = scmp.ne.s32.totalorder %s38, %s41
      %p50 = scmp.eq.s32.totalorder %s19, 1
      %p51 = por %p49, %p50
      %p52 = scmp.ne.s32.totalorder %s41, %s42
      %p53 = scmp.eq.s32.totalorder %s19, 0
      %p54 = por %p52, %p53
      %p55 = scmp.ne.s32.totalorder %s41, %s42
      %p56 = scmp.eq.s32.totalorder %s20, 1
      %p57 = por %p55, %p56
      %p59 = scmp.ne.s32.totalorder %s42, %s58
      %p60 = scmp.eq.s32.totalorder %s20, 0
      %p61 = por %p59, %p60
      %s63 = sadd.s32 %s62, 1
      %p66 = scmp.eq.s32.totalorder %s14, 1
      %p67 = scmp.ne.s32.totalorder %s62, %s64
      %p68 = scmp.eq.s32.totalorder %s14, 0
      %p69 = por %p67, %p68
      %p70 = scmp.ne.s32.totalorder %s62, %s64
      %p71 = scmp.eq.s32.totalorder %s19, 1
      %p72 = por %p70, %p71
      %p73 = scmp.ne.s32.totalorder %s64, %s65
      %p74 = scmp.eq.s32.totalorder %s19, 0
      %p75 = por %p73, %p74
      %p76 = scmp.ne.s32.totalorder %s64, %s65
      %p77 = scmp.eq.s32.totalorder %s20, 1
      %p78 = por %p76, %p77
      %p80 = scmp.ne.s32.totalorder %s65, %s79
      %p81 = scmp.eq.s32.totalorder %s20, 0
      %p82 = por %p80, %p81
      %s84 = sadd.s32 %s83, 1
      %p87 = scmp.eq.s32.totalorder %s14, 1
      %p88 = scmp.ne.s32.totalorder %s83, %s85
      %p89 = scmp.eq.s32.totalorder %s14, 0
      %p90 = por %p88, %p89
      %p91 = scmp.ne.s32.totalorder %s83, %s85
      %p92 = scmp.eq.s32.totalorder %s19, 1
      %p93 = por %p91, %p92
      %p94 = scmp.ne.s32.totalorder %s85, %s86
      %p95 = scmp.eq.s32.totalorder %s19, 0
      %p96 = por %p94, %p95
      %p97 = scmp.ne.s32.totalorder %s85, %s86
      %p98 = scmp.eq.s32.totalorder %s20, 1
      %p99 = por %p97, %p98
      %p101 = scmp.ne.s32.totalorder %s86, %s100
      %p102 = scmp.eq.s32.totalorder %s20, 0
      %p103 = por %p101, %p102
      %s105 = sadd.s32 %s104, 1
      %p108 = scmp.eq.s32.totalorder %s14, 1
      %p109 = scmp.ne.s32.totalorder %s104, %s106
      %p110 = scmp.eq.s32.totalorder %s14, 0
      %p111 = por %p109, %p110
      %p112 = scmp.ne.s32.totalorder %s104, %s106
      %p113 = scmp.eq.s32.totalorder %s19, 1
      %p114 = por %p112, %p113
      %p115 = scmp.ne.s32.totalorder %s106, %s107
      %p116 = scmp.eq.s32.totalorder %s19, 0
      %p117 = por %p115, %p116
      %p118 = scmp.ne.s32.totalorder %s106, %s107
      %p119 = scmp.eq.s32.totalorder %s20, 1
      %p120 = por %p118, %p119
      %p122 = scmp.ne.s32.totalorder %s107, %s121
      %p123 = scmp.eq.s32.totalorder %s20, 0
      %p124 = por %p122, %p123
      %s125 = ssub.s32 %s21, %s33
      %s126 = ssub.s32 %s22, %s29
      %s127 = sor.u32 %s125, %s126
      %p128 = scmp.eq.s32.totalorder %s127, 0
      %s130 = sadd.s32 %s129, 1
      %s131 = scalar_select %p128, %s129, %s130
      %p134 = pneg %p128
      %p135 = scmp.eq.s32.totalorder %s14, 1
      %p136 = por %p134, %p135
      %p137 = scmp.ne.s32.totalorder %s129, %s132
      %p138 = scmp.eq.s32.totalorder %s14, 0
      %p139 = por %p137, %p138
      %p140 = scmp.ne.s32.totalorder %s129, %s132
      %p141 = scmp.eq.s32.totalorder %s19, 1
      %p142 = por %p140, %p141
      %p143 = scmp.ne.s32.totalorder %s132, %s133
      %p144 = scmp.eq.s32.totalorder %s19, 0
      %p145 = por %p143, %p144
      %p146 = scmp.ne.s32.totalorder %s132, %s133
      %p147 = scmp.eq.s32.totalorder %s20, 1
      %p148 = por %p146, %p147
      %p150 = scmp.ne.s32.totalorder %s133, %s149
      %p151 = scmp.eq.s32.totalorder %s20, 0
      %p152 = por %p150, %p151
      %p153 = scmp.le.s32.totalorder 1, %s14
      %p154 = scmp.lt.s32.totalorder %s14, 3
      %p155 = pnand %p153, %p154
      %p156 = pneg %p155
      // Predicated region
      $region9: #{tpu_custom_call.1} parent=5 // pred_check
        _
      $region10: #{tpu_custom_call.1} parent=5 // pred_check_branch
        %158 = sbr.rel (%p155) target = $region12
      $region11: #{tpu_custom_call.1} parent=5 // pred_region
        %s159 = ssub.s32 %s14, 1
        // Predicated region
        $region13: #{tpu_custom_call.1} parent=11 // pred_check
          %p160 = pneg %p75
        $region14: #{tpu_custom_call.1} parent=11 // pred_check_branch
          %162 = sbr.rel (%p160) target = $region16
        $region15: #{tpu_custom_call.1} parent=11 // pred_region
          %s164 = ssub.s32 12288, 12288
          %165 = vsyncadd [#allocation3], %s164
          %s166 = sshll.u32 [#allocation2], 4
          %s167 = int_to_ptr.vmem [resolvable:$true] %s166
          %172 = dma.hbm_to_vmem [thread:$0]  %s1, 12288, %s167, [#allocation3], 128, 128, 8
        $region16: #{tpu_custom_call.1} parent=11 // pred_fallthru
          _
        // Predicated region
        $region17: #{tpu_custom_call.1} parent=11 // pred_check
          %p173 = pneg %p96
        $region18: #{tpu_custom_call.1} parent=11 // pred_check_branch
          %175 = sbr.rel (%p173) target = $region20
        $region19: #{tpu_custom_call.1} parent=11 // pred_region
          _
        $region20: #{tpu_custom_call.1} parent=11 // pred_fallthru
          _
        // Predicated region
        $region21: #{tpu_custom_call.1} parent=11 // pred_check
          %p176 = pneg %p117
        $region22: #{tpu_custom_call.1} parent=11 // pred_check_branch
          %178 = sbr.rel (%p176) target = $region24
        $region23: #{tpu_custom_call.1} parent=11 // pred_region
          _
        $region24: #{tpu_custom_call.1} parent=11 // pred_fallthru
          _
      $region12: #{tpu_custom_call.1} parent=5 // pred_fallthru
        _
      %p179 = scmp.lt.s32.totalorder %s14, 2
      // Predicated region
      $region25: #{tpu_custom_call.1} parent=5 // pred_check
        %p180 = pneg %p179
      $region26: #{tpu_custom_call.1} parent=5 // pred_check_branch
        %182 = sbr.rel (%p180) target = $region28
      $region27: #{tpu_custom_call.1} parent=5 // pred_region
        // Predicated region
        $region29: #{tpu_custom_call.1} parent=27 // pred_check
          %p183 = pneg %p48
        $region30: #{tpu_custom_call.1} parent=27 // pred_check_branch
          %185 = sbr.rel (%p183) target = $region32
        $region31: #{tpu_custom_call.1} parent=27 // pred_region
          %s186 = smul.u32 2, %s22
          %p187 = scmp.lt.s32.totalorder %s21, 1
          %s188 = scalar_select %p187, %s21, 1
          %p189 = scmp.lt.s32.totalorder %s186, 1
          %s190 = scalar_select %p189, %s186, 1
          %s191 = smul.addr %s188, 2
          %s192 = sadd.s32 %s190, %s191
          %s193 = smul.addr %s192, 2
          %s194 = scalar_lea.vmem %s0, %s193
          %s195 = smul.u32 2, %s22
        $region32: #{tpu_custom_call.1} parent=27 // pred_fallthru
          _
      $region28: #{tpu_custom_call.1} parent=5 // pred_fallthru
        _
      %p196 = scmp.le.s32.totalorder 1, %s14
      %p197 = scmp.lt.s32.totalorder %s14, 3
      %p198 = pnand %p196, %p197
      %p199 = pneg %p198
      // Predicated region
      $region33: #{tpu_custom_call.1} parent=5 // pred_check
        _
      $region34: #{tpu_custom_call.1} parent=5 // pred_check_branch
        %201 = sbr.rel (%p198) target = $region36
      $region35: #{tpu_custom_call.1} parent=5 // pred_region
        %s202 = ssub.s32 %s14, 1
        // Predicated region
        $region37: #{tpu_custom_call.1} parent=35 // pred_check
          %p203 = pneg %p75
        $region38: #{tpu_custom_call.1} parent=35 // pred_check_branch
          %205 = sbr.rel (%p203) target = $region40
        $region39: #{tpu_custom_call.1} parent=35 // pred_region
          %206 = dma.done [#allocation3], 12288
        $region40: #{tpu_custom_call.1} parent=35 // pred_fallthru
          _
        %s207 = smul.u32 2, %s24
        %p208 = scmp.lt.s32.totalorder %s23, 1
        %s209 = scalar_select %p208, %s23, 1
        %p210 = scmp.lt.s32.totalorder %s207, 1
        %s211 = scalar_select %p210, %s207, 1
        %s212 = smul.addr %s209, 2
        %s213 = sadd.s32 %s211, %s212
        %s214 = smul.addr %s213, 2
        %s215 = scalar_lea.vmem %s0, %s214
        %p216 = pneg %p54
        %p217 = pneg %p51
        %p218 = pneg %p75
        %p219 = pneg %p72
        %p220 = pneg %p96
        %p221 = pneg %p93
        %p222 = pneg %p117
        %p223 = pneg %p114
        %p224 = pneg %p145
        %p225 = pneg %p142
        %s226 = sand.u32 %s132, 1
        %s227 = scalar_lea.sflag [#allocation4], %s226
        %s228 = sand.u32 %s132, 1
        %s229 = smul.addr %s228, 16
        %s230 = scalar_lea.vmem [#allocation5], %s229
        %s231 = smul.u32 2, %s24
        %p232 = scmp.lt.s32.totalorder %s23, 1
        %s233 = scalar_select %p232, %s23, 1
        %p234 = scmp.lt.s32.totalorder %s231, 1
        %s235 = scalar_select %p234, %s231, 1
        %s236 = smul.addr %s233, 2
        %s237 = sadd.s32 %s235, %s236
        %s238 = smul.addr %s237, 2
        %s239 = scalar_lea.vmem %s0, %s238
        %s240 = smul.u32 2, %s24
        %s241 = smul.u32 2, %s24
        %v243 = vld [vmem:[%s239] sm:$0xf]
        %v244 = vld [vmem:[%s2] sm:$0xf]
        %v245 = vld [vmem:[%s2 + $0x4] sm:$0xf]
        %v246 = vld [vmem:[%s2 + $0x8] sm:$0xf]
        %v247 = vld [vmem:[%s2 + $0xc] sm:$0xf]
        %v252 = vunpack.c.l.b16 %v244
        %v253 = vunpack.c.l.b16 %v245
        %v254 = vunpack.c.l.b16 %v246
        %v255 = vunpack.c.l.b16 %v247
        %v256 = vpack.c.b16 %v253, %v252
        %v257 = vpack.c.b16 %v255, %v254
        %v260 = vunpack.c.l.s4 1983009808
        %v261 = vunpack.c.0.s8 %v260
        %v262 = vlaneseq
        %v263 = vshrl.u32 %v262, 7
        %v264 = vsub.s32 %v261, %v263
        %v265 = vrot.slane %v243, %v264
        %v266 = vcombine.high %v265, %v265
        %vm267 = vcmask 31744
        %v269 = vsel %vm267, %v256, 0
        %v272 = vsel %vm267, %v257, 0
        %vm274 = vcmask 1041408
        %v276 = vsel %vm274, %v265, 0
        %v279 = vsel %vm274, %v266, 0
        %281 = vmatprep.subr.bf16.mxu0 0
        %282 = vmatpush1.bf16.msra.mxu0 0
        %283 = vmatprep.subr.bf16.mxu0 0
        %284 = vmatpush1.bf16.msra.mxu0 0
        %285 = vmatprep.subr.bf16.mxu0 0
        %286 = vmatpush1.bf16.msra.mxu0 0
        %287 = vmatprep.subr.bf16.mxu0 0
        %288 = vmatpush1.bf16.msra.mxu0 0
        %289 = vmatprep.subr.bf16.mxu0 0
        %290 = vmatpush1.bf16.msra.mxu0 0
        %291 = vmatprep.subr.bf16.mxu0 0
        %292 = vmatpush1.bf16.msra.mxu0 0
        %293 = vmatprep.subr.bf16.mxu0 0
        %294 = vmatpush1.bf16.msra.mxu0 0
        %295 = vmatprep.subr.bf16.mxu0 %v279
        %296 = vmatpush1.bf16.msra.mxu0 %v276
        %297 = vmatprep.subr.bf16.mxu0 0
        %298 = vmatpush2.bf16.msra.mxu0 0
        %299 = vmatprep.subr.bf16.mxu0 0
        %300 = vmatpush2.bf16.msra.mxu0 0
        %301 = vmatprep.subr.bf16.mxu0 0
        %302 = vmatpush2.bf16.msra.mxu0 0
        %303 = vmatprep.subr.bf16.mxu0 0
        %304 = vmatpush2.bf16.msra.mxu0 0
        %305 = vmatprep.subr.bf16.mxu0 0
        %306 = vmatpush2.bf16.msra.mxu0 0
        %307 = vmatprep.subr.bf16.mxu0 0
        %308 = vmatpush2.bf16.msra.mxu0 0
        %309 = vmatprep.subr.bf16.mxu0 0
        %310 = vmatpush2.bf16.msra.mxu0 0
        %311 = vmatprep.subr.bf16.mxu0 0
        %312 = vmatpush2.bf16.msra.mxu0 0
        %313 = vmatprep.mubr.bf16.mxu0 0
        %314 = vmatmul.mubr.bf16.gmra.mxu0 %v269
        %v315 = vpop.f32.mrf.mxu0
        %v316 = vadd.f32 0.0, %v315
        %v317 = vpop.f32.mrf.mxu0
        %v318 = vadd.f32 0.0, %v317
        %v319 = vpop.f32.mrf.mxu0
        %v320 = vadd.f32 0.0, %v319
        %v321 = vpop.f32.mrf.mxu0
        %v322 = vadd.f32 0.0, %v321
        %323 = vmatprep.mubr.bf16.mxu0 0
        %324 = vmatmul.mubr.bf16.gmra.mxu0 %v272
        %v325 = vpop.f32.mrf.mxu0
        %v326 = vadd.f32 0.0, %v325
        %v327 = vpop.f32.mrf.mxu0
        %v328 = vadd.f32 0.0, %v327
        %v329 = vpop.f32.mrf.mxu0
        %v330 = vadd.f32 0.0, %v329
        %v331 = vpop.f32.mrf.mxu0
        %v332 = vadd.f32 0.0, %v331
        %333 = vdwg.mxu0
        %v334 = vpack.c.bf16 %v320, %v316
        %v335 = vpack.c.bf16 %v322, %v318
        %v336 = vpack.c.bf16 %v326, %v326
        %v337 = vpack.c.bf16 %v328, %v328
        %v338 = vld [vmem:[#allocation2] sm:$0xff]
        %v339 = vld [vmem:[#allocation2 + $0x8] sm:$0xff]
        %v340 = vld [vmem:[#allocation2 + $0x10] sm:$0xff]
        %v341 = vld [vmem:[#allocation2 + $0x18] sm:$0xff]
        %v342 = vld [vmem:[#allocation2 + $0x20] sm:$0xff]
        %v343 = vld [vmem:[#allocation2 + $0x28] sm:$0xff]
        %v344 = vld [vmem:[#allocation2 + $0x30] sm:$0xff]
        %v345 = vld [vmem:[#allocation2 + $0x38] sm:$0xff]
        %v346 = vld [vmem:[#allocation2 + $0x40] sm:$0xff]
        %v347 = vld [vmem:[#allocation2 + $0x48] sm:$0xff]
        %v348 = vld [vmem:[#allocation2 + $0x50] sm:$0xff]
        %v349 = vld [vmem:[#allocation2 + $0x58] sm:$0xff]
        %v350 = vld [vmem:[#allocation2 + $0x60] sm:$0xff]
        %v351 = vld [vmem:[#allocation2 + $0x68] sm:$0xff]
        %v352 = vld [vmem:[#allocation2 + $0x70] sm:$0xff]
        %v353 = vld [vmem:[#allocation2 + $0x78] sm:$0xff]
        %v354 = vld [vmem:[#allocation2 + $0x80] sm:$0xff]
        %v355 = vld [vmem:[#allocation2 + $0x88] sm:$0xff]
        %v356 = vld [vmem:[#allocation2 + $0x90] sm:$0xff]
        %v357 = vld [vmem:[#allocation2 + $0x98] sm:$0xff]
        %v358 = vld [vmem:[#allocation2 + $0xa0] sm:$0xff]
        %v359 = vld [vmem:[#allocation2 + $0xa8] sm:$0xff]
        %v360 = vld [vmem:[#allocation2 + $0xb0] sm:$0xff]
        %v361 = vld [vmem:[#allocation2 + $0xb8] sm:$0xff]
        %v362 = vld [vmem:[#allocation2 + $0xc0] sm:$0xff]
        %v363 = vld [vmem:[#allocation2 + $0xc8] sm:$0xff]
        %v364 = vld [vmem:[#allocation2 + $0xd0] sm:$0xff]
        %v365 = vld [vmem:[#allocation2 + $0xd8] sm:$0xff]
        %v366 = vld [vmem:[#allocation2 + $0xe0] sm:$0xff]
        %v367 = vld [vmem:[#allocation2 + $0xe8] sm:$0xff]
        %v368 = vld [vmem:[#allocation2 + $0xf0] sm:$0xff]
        %v369 = vld [vmem:[#allocation2 + $0xf8] sm:$0xff]
        %s370 = scalar_lea.vmem [#allocation2], 256
        %v371 = vld [vmem:[%s370] sm:$0xff]
        %v372 = vld [vmem:[%s370 + $0x8] sm:$0xff]
        %v373 = vld [vmem:[%s370 + $0x10] sm:$0xff]
        %v374 = vld [vmem:[%s370 + $0x18] sm:$0xff]
        %v375 = vld [vmem:[%s370 + $0x20] sm:$0xff]
        %v376 = vld [vmem:[%s370 + $0x28] sm:$0xff]
        %v377 = vld [vmem:[%s370 + $0x30] sm:$0xff]
        %v378 = vld [vmem:[%s370 + $0x38] sm:$0xff]
        %v379 = vld [vmem:[%s370 + $0x40] sm:$0xff]
        %v380 = vld [vmem:[%s370 + $0x48] sm:$0xff]
        %v381 = vld [vmem:[%s370 + $0x50] sm:$0xff]
        %v382 = vld [vmem:[%s370 + $0x58] sm:$0xff]
        %v383 = vld [vmem:[%s370 + $0x60] sm:$0xff]
        %v384 = vld [vmem:[%s370 + $0x68] sm:$0xff]
        %v385 = vld [vmem:[%s370 + $0x70] sm:$0xff]
        %v386 = vld [vmem:[%s370 + $0x78] sm:$0xff]
        %v387 = vld [vmem:[%s370 + $0x80] sm:$0xff]
        %v388 = vld [vmem:[%s370 + $0x88] sm:$0xff]
        %v389 = vld [vmem:[%s370 + $0x90] sm:$0xff]
        %v390 = vld [vmem:[%s370 + $0x98] sm:$0xff]
        %v391 = vld [vmem:[%s370 + $0xa0] sm:$0xff]
        %v392 = vld [vmem:[%s370 + $0xa8] sm:$0xff]
        %v393 = vld [vmem:[%s370 + $0xb0] sm:$0xff]
        %v394 = vld [vmem:[%s370 + $0xb8] sm:$0xff]
        %v395 = vld [vmem:[%s370 + $0xc0] sm:$0xff]
        %v396 = vld [vmem:[%s370 + $0xc8] sm:$0xff]
        %v397 = vld [vmem:[%s370 + $0xd0] sm:$0xff]
        %v398 = vld [vmem:[%s370 + $0xd8] sm:$0xff]
        %v399 = vld [vmem:[%s370 + $0xe0] sm:$0xff]
        %v400 = vld [vmem:[%s370 + $0xe8] sm:$0xff]
        %v401 = vld [vmem:[%s370 + $0xf0] sm:$0xff]
        %v402 = vld [vmem:[%s370 + $0xf8] sm:$0xff]
        %v405 = vrot.slane %v334, 4
        %v406 = vrot.slane %v335, 4
        %v441 = vunpack.c.l.b16 %v371
        %v442 = vunpack.c.h.b16 %v371
        %v443 = vunpack.c.l.b16 %v372
        %v444 = vunpack.c.h.b16 %v372
        %v445 = vunpack.c.l.b16 %v373
        %v446 = vunpack.c.h.b16 %v373
        %v447 = vunpack.c.l.b16 %v374
        %v448 = vunpack.c.h.b16 %v374
        %v449 = vunpack.c.l.b16 %v375
        %v450 = vunpack.c.h.b16 %v375
        %v451 = vunpack.c.l.b16 %v376
        %v452 = vunpack.c.h.b16 %v376
        %v453 = vunpack.c.l.b16 %v377
        %v454 = vunpack.c.h.b16 %v377
        %v455 = vunpack.c.l.b16 %v378
        %v456 = vunpack.c.h.b16 %v378
        %v457 = vunpack.c.l.b16 %v379
        %v458 = vunpack.c.h.b16 %v379
        %v459 = vunpack.c.l.b16 %v380
        %v460 = vunpack.c.h.b16 %v380
        %v461 = vunpack.c.l.b16 %v381
        %v462 = vunpack.c.h.b16 %v381
        %v463 = vunpack.c.l.b16 %v382
        %v464 = vunpack.c.h.b16 %v382
        %v465 = vunpack.c.l.b16 %v383
        %v466 = vunpack.c.h.b16 %v383
        %v467 = vunpack.c.l.b16 %v384
        %v468 = vunpack.c.h.b16 %v384
        %v469 = vunpack.c.l.b16 %v385
        %v470 = vunpack.c.h.b16 %v385
        %v471 = vunpack.c.l.b16 %v386
        %v472 = vunpack.c.h.b16 %v386
        %v473 = vunpack.c.l.b16 %v387
        %v474 = vunpack.c.h.b16 %v387
        %v475 = vunpack.c.l.b16 %v388
        %v476 = vunpack.c.h.b16 %v388
        %v477 = vunpack.c.l.b16 %v389
        %v478 = vunpack.c.h.b16 %v389
        %v479 = vunpack.c.l.b16 %v390
        %v480 = vunpack.c.h.b16 %v390
        %v481 = vunpack.c.l.b16 %v391
        %v482 = vunpack.c.h.b16 %v391
        %v483 = vunpack.c.l.b16 %v392
        %v484 = vunpack.c.h.b16 %v392
        %v485 = vunpack.c.l.b16 %v393
        %v486 = vunpack.c.h.b16 %v393
        %v487 = vunpack.c.l.b16 %v394
        %v488 = vunpack.c.h.b16 %v394
        %v489 = vunpack.c.l.b16 %v395
        %v490 = vunpack.c.h.b16 %v395
        %v491 = vunpack.c.l.b16 %v396
        %v492 = vunpack.c.h.b16 %v396
        %v493 = vunpack.c.l.b16 %v397
        %v494 = vunpack.c.h.b16 %v397
        %v495 = vunpack.c.l.b16 %v398
        %v496 = vunpack.c.h.b16 %v398
        %v497 = vunpack.c.l.b16 %v399
        %v498 = vunpack.c.h.b16 %v399
        %v499 = vunpack.c.l.b16 %v400
        %v500 = vunpack.c.h.b16 %v400
        %v501 = vunpack.c.l.b16 %v401
        %v502 = vunpack.c.h.b16 %v401
        %v503 = vunpack.c.l.b16 %v402
        %v504 = vunpack.c.h.b16 %v402
        %v505 = vpack.c.b16 %v443, %v441
        %v506 = vpack.c.b16 %v444, %v442
        %v507 = vpack.c.b16 %v447, %v445
        %v508 = vpack.c.b16 %v448, %v446
        %v509 = vpack.c.b16 %v451, %v449
        %v510 = vpack.c.b16 %v452, %v450
        %v511 = vpack.c.b16 %v455, %v453
        %v512 = vpack.c.b16 %v456, %v454
        %v513 = vpack.c.b16 %v459, %v457
        %v514 = vpack.c.b16 %v460, %v458
        %v515 = vpack.c.b16 %v463, %v461
        %v516 = vpack.c.b16 %v464, %v462
        %v517 = vpack.c.b16 %v467, %v465
        %v518 = vpack.c.b16 %v468, %v466
        %v519 = vpack.c.b16 %v471, %v469
        %v520 = vpack.c.b16 %v472, %v470
        %v521 = vpack.c.b16 %v475, %v473
        %v522 = vpack.c.b16 %v476, %v474
        %v523 = vpack.c.b16 %v479, %v477
        %v524 = vpack.c.b16 %v480, %v478
        %v525 = vpack.c.b16 %v483, %v481
        %v526 = vpack.c.b16 %v484, %v482
        %v527 = vpack.c.b16 %v487, %v485
        %v528 = vpack.c.b16 %v488, %v486
        %v529 = vpack.c.b16 %v491, %v489
        %v530 = vpack.c.b16 %v492, %v490
        %v531 = vpack.c.b16 %v495, %v493
        %v532 = vpack.c.b16 %v496, %v494
        %v533 = vpack.c.b16 %v499, %v497
        %v534 = vpack.c.b16 %v500, %v498
        %v535 = vpack.c.b16 %v503, %v501
        %v536 = vpack.c.b16 %v504, %v502
        %569 = vmatprep.subr.bf16.mxu0 %v520
        %570 = vmatpush1.bf16.msra.mxu0 %v519
        %571 = vmatprep.subr.bf16.mxu0 %v518
        %572 = vmatpush1.bf16.msra.mxu0 %v517
        %573 = vmatprep.subr.bf16.mxu0 %v516
        %574 = vmatpush1.bf16.msra.mxu0 %v515
        %575 = vmatprep.subr.bf16.mxu0 %v514
        %576 = vmatpush1.bf16.msra.mxu0 %v513
        %577 = vmatprep.subr.bf16.mxu0 %v512
        %578 = vmatpush1.bf16.msra.mxu0 %v511
        %579 = vmatprep.subr.bf16.mxu0 %v510
        %580 = vmatpush1.bf16.msra.mxu0 %v509
        %581 = vmatprep.subr.bf16.mxu0 %v508
        %582 = vmatpush1.bf16.msra.mxu0 %v507
        %583 = vmatprep.subr.bf16.mxu0 %v506
        %584 = vmatpush1.bf16.msra.mxu0 %v505
        %585 = vmatprep.subr.bf16.mxu0 %v536
        %586 = vmatpush2.bf16.msra.mxu0 %v535
        %587 = vmatprep.subr.bf16.mxu0 %v534
        %588 = vmatpush2.bf16.msra.mxu0 %v533
        %589 = vmatprep.subr.bf16.mxu0 %v532
        %590 = vmatpush2.bf16.msra.mxu0 %v531
        %591 = vmatprep.subr.bf16.mxu0 %v530
        %592 = vmatpush2.bf16.msra.mxu0 %v529
        %593 = vmatprep.subr.bf16.mxu0 %v528
        %594 = vmatpush2.bf16.msra.mxu0 %v527
        %595 = vmatprep.subr.bf16.mxu0 %v526
        %596 = vmatpush2.bf16.msra.mxu0 %v525
        %597 = vmatprep.subr.bf16.mxu0 %v524
        %598 = vmatpush2.bf16.msra.mxu0 %v523
        %599 = vmatprep.subr.bf16.mxu0 %v522
        %600 = vmatpush2.bf16.msra.mxu0 %v521
        %601 = vmatprep.mubr.bf16.mxu0 %v406
        %602 = vmatmul.mubr.bf16.gmra.mxu0 %v405
        %v603 = vpop.f32.mrf.mxu0
        %v604 = vadd.f32 0.0, %v603
        %v605 = vpop.f32.mrf.mxu0
        %v606 = vadd.f32 0.0, %v605
        %v607 = vpop.f32.mrf.mxu0
        %v608 = vpop.f32.mrf.mxu0
        %609 = vdwg.mxu0
        %v642 = vunpack.c.l.b16 %v338
        %v643 = vunpack.c.h.b16 %v338
        %v644 = vunpack.c.l.b16 %v339
        %v645 = vunpack.c.h.b16 %v339
        %v646 = vunpack.c.l.b16 %v340
        %v647 = vunpack.c.h.b16 %v340
        %v648 = vunpack.c.l.b16 %v341
        %v649 = vunpack.c.h.b16 %v341
        %v650 = vunpack.c.l.b16 %v342
        %v651 = vunpack.c.h.b16 %v342
        %v652 = vunpack.c.l.b16 %v343
        %v653 = vunpack.c.h.b16 %v343
        %v654 = vunpack.c.l.b16 %v344
        %v655 = vunpack.c.h.b16 %v344
        %v656 = vunpack.c.l.b16 %v345
        %v657 = vunpack.c.h.b16 %v345
        %v658 = vunpack.c.l.b16 %v346
        %v659 = vunpack.c.h.b16 %v346
        %v660 = vunpack.c.l.b16 %v347
        %v661 = vunpack.c.h.b16 %v347
        %v662 = vunpack.c.l.b16 %v348
        %v663 = vunpack.c.h.b16 %v348
        %v664 = vunpack.c.l.b16 %v349
        %v665 = vunpack.c.h.b16 %v349
        %v666 = vunpack.c.l.b16 %v350
        %v667 = vunpack.c.h.b16 %v350
        %v668 = vunpack.c.l.b16 %v351
        %v669 = vunpack.c.h.b16 %v351
        %v670 = vunpack.c.l.b16 %v352
        %v671 = vunpack.c.h.b16 %v352
        %v672 = vunpack.c.l.b16 %v353
        %v673 = vunpack.c.h.b16 %v353
        %v674 = vunpack.c.l.b16 %v354
        %v675 = vunpack.c.h.b16 %v354
        %v676 = vunpack.c.l.b16 %v355
        %v677 = vunpack.c.h.b16 %v355
        %v678 = vunpack.c.l.b16 %v356
        %v679 = vunpack.c.h.b16 %v356
        %v680 = vunpack.c.l.b16 %v357
        %v681 = vunpack.c.h.b16 %v357
        %v682 = vunpack.c.l.b16 %v358
        %v683 = vunpack.c.h.b16 %v358
        %v684 = vunpack.c.l.b16 %v359
        %v685 = vunpack.c.h.b16 %v359
        %v686 = vunpack.c.l.b16 %v360
        %v687 = vunpack.c.h.b16 %v360
        %v688 = vunpack.c.l.b16 %v361
        %v689 = vunpack.c.h.b16 %v361
        %v690 = vunpack.c.l.b16 %v362
        %v691 = vunpack.c.h.b16 %v362
        %v692 = vunpack.c.l.b16 %v363
        %v693 = vunpack.c.h.b16 %v363
        %v694 = vunpack.c.l.b16 %v364
        %v695 = vunpack.c.h.b16 %v364
        %v696 = vunpack.c.l.b16 %v365
        %v697 = vunpack.c.h.b16 %v365
        %v698 = vunpack.c.l.b16 %v366
        %v699 = vunpack.c.h.b16 %v366
        %v700 = vunpack.c.l.b16 %v367
        %v701 = vunpack.c.h.b16 %v367
        %v702 = vunpack.c.l.b16 %v368
        %v703 = vunpack.c.h.b16 %v368
        %v704 = vunpack.c.l.b16 %v369
        %v705 = vunpack.c.h.b16 %v369
        %v706 = vpack.c.b16 %v644, %v642
        %v707 = vpack.c.b16 %v645, %v643
        %v708 = vpack.c.b16 %v648, %v646
        %v709 = vpack.c.b16 %v649, %v647
        %v710 = vpack.c.b16 %v652, %v650
        %v711 = vpack.c.b16 %v653, %v651
        %v712 = vpack.c.b16 %v656, %v654
        %v713 = vpack.c.b16 %v657, %v655
        %v714 = vpack.c.b16 %v660, %v658
        %v715 = vpack.c.b16 %v661, %v659
        %v716 = vpack.c.b16 %v664, %v662
        %v717 = vpack.c.b16 %v665, %v663
        %v718 = vpack.c.b16 %v668, %v666
        %v719 = vpack.c.b16 %v669, %v667
        %v720 = vpack.c.b16 %v672, %v670
        %v721 = vpack.c.b16 %v673, %v671
        %v722 = vpack.c.b16 %v676, %v674
        %v723 = vpack.c.b16 %v677, %v675
        %v724 = vpack.c.b16 %v680, %v678
        %v725 = vpack.c.b16 %v681, %v679
        %v726 = vpack.c.b16 %v684, %v682
        %v727 = vpack.c.b16 %v685, %v683
        %v728 = vpack.c.b16 %v688, %v686
        %v729 = vpack.c.b16 %v689, %v687
        %v730 = vpack.c.b16 %v692, %v690
        %v731 = vpack.c.b16 %v693, %v691
        %v732 = vpack.c.b16 %v696, %v694
        %v733 = vpack.c.b16 %v697, %v695
        %v734 = vpack.c.b16 %v700, %v698
        %v735 = vpack.c.b16 %v701, %v699
        %v736 = vpack.c.b16 %v704, %v702
        %v737 = vpack.c.b16 %v705, %v703
        %770 = vmatprep.subr.bf16.mxu0 %v721
        %771 = vmatpush1.bf16.msra.mxu0 %v720
        %772 = vmatprep.subr.bf16.mxu0 %v719
        %773 = vmatpush1.bf16.msra.mxu0 %v718
        %774 = vmatprep.subr.bf16.mxu0 %v717
        %775 = vmatpush1.bf16.msra.mxu0 %v716
        %776 = vmatprep.subr.bf16.mxu0 %v715
        %777 = vmatpush1.bf16.msra.mxu0 %v714
        %778 = vmatprep.subr.bf16.mxu0 %v713
        %779 = vmatpush1.bf16.msra.mxu0 %v712
        %780 = vmatprep.subr.bf16.mxu0 %v711
        %781 = vmatpush1.bf16.msra.mxu0 %v710
        %782 = vmatprep.subr.bf16.mxu0 %v709
        %783 = vmatpush1.bf16.msra.mxu0 %v708
        %784 = vmatprep.subr.bf16.mxu0 %v707
        %785 = vmatpush1.bf16.msra.mxu0 %v706
        %786 = vmatprep.subr.bf16.mxu0 %v737
        %787 = vmatpush2.bf16.msra.mxu0 %v736
        %788 = vmatprep.subr.bf16.mxu0 %v735
        %789 = vmatpush2.bf16.msra.mxu0 %v734
        %790 = vmatprep.subr.bf16.mxu0 %v733
        %791 = vmatpush2.bf16.msra.mxu0 %v732
        %792 = vmatprep.subr.bf16.mxu0 %v731
        %793 = vmatpush2.bf16.msra.mxu0 %v730
        %794 = vmatprep.subr.bf16.mxu0 %v729
        %795 = vmatpush2.bf16.msra.mxu0 %v728
        %796 = vmatprep.subr.bf16.mxu0 %v727
        %797 = vmatpush2.bf16.msra.mxu0 %v726
        %798 = vmatprep.subr.bf16.mxu0 %v725
        %799 = vmatpush2.bf16.msra.mxu0 %v724
        %800 = vmatprep.subr.bf16.mxu0 %v723
        %801 = vmatpush2.bf16.msra.mxu0 %v722
        %802 = vmatprep.mubr.bf16.mxu0 %v335
        %803 = vmatmul.mubr.bf16.gmra.mxu0 %v334
        %v804 = vpop.f32.mrf.mxu0
        %v805 = vadd.f32 %v604, %v804
        %v806 = vpop.f32.mrf.mxu0
        %v807 = vadd.f32 %v606, %v806
        %v808 = vpop.f32.mrf.mxu0
        %v809 = vpop.f32.mrf.mxu0
        %810 = vdwg.mxu0
        %s811 = scalar_lea.vmem [#allocation2], 512
        %v812 = vld [vmem:[%s811] sm:$0xff]
        %v813 = vld [vmem:[%s811 + $0x8] sm:$0xff]
        %v814 = vld [vmem:[%s811 + $0x10] sm:$0xff]
        %v815 = vld [vmem:[%s811 + $0x18] sm:$0xff]
        %v816 = vld [vmem:[%s811 + $0x20] sm:$0xff]
        %v817 = vld [vmem:[%s811 + $0x28] sm:$0xff]
        %v818 = vld [vmem:[%s811 + $0x30] sm:$0xff]
        %v819 = vld [vmem:[%s811 + $0x38] sm:$0xff]
        %v820 = vld [vmem:[%s811 + $0x40] sm:$0xff]
        %v821 = vld [vmem:[%s811 + $0x48] sm:$0xff]
        %v822 = vld [vmem:[%s811 + $0x50] sm:$0xff]
        %v823 = vld [vmem:[%s811 + $0x58] sm:$0xff]
        %v824 = vld [vmem:[%s811 + $0x60] sm:$0xff]
        %v825 = vld [vmem:[%s811 + $0x68] sm:$0xff]
        %v826 = vld [vmem:[%s811 + $0x70] sm:$0xff]
        %v827 = vld [vmem:[%s811 + $0x78] sm:$0xff]
        %v828 = vld [vmem:[%s811 + $0x80] sm:$0xff]
        %v829 = vld [vmem:[%s811 + $0x88] sm:$0xff]
        %v830 = vld [vmem:[%s811 + $0x90] sm:$0xff]
        %v831 = vld [vmem:[%s811 + $0x98] sm:$0xff]
        %v832 = vld [vmem:[%s811 + $0xa0] sm:$0xff]
        %v833 = vld [vmem:[%s811 + $0xa8] sm:$0xff]
        %v834 = vld [vmem:[%s811 + $0xb0] sm:$0xff]
        %v835 = vld [vmem:[%s811 + $0xb8] sm:$0xff]
        %v836 = vld [vmem:[%s811 + $0xc0] sm:$0xff]
        %v837 = vld [vmem:[%s811 + $0xc8] sm:$0xff]
        %v838 = vld [vmem:[%s811 + $0xd0] sm:$0xff]
        %v839 = vld [vmem:[%s811 + $0xd8] sm:$0xff]
        %v840 = vld [vmem:[%s811 + $0xe0] sm:$0xff]
        %v841 = vld [vmem:[%s811 + $0xe8] sm:$0xff]
        %v842 = vld [vmem:[%s811 + $0xf0] sm:$0xff]
        %v843 = vld [vmem:[%s811 + $0xf8] sm:$0xff]
        %v876 = vunpack.c.l.b16 %v812
        %v877 = vunpack.c.h.b16 %v812
        %v878 = vunpack.c.l.b16 %v813
        %v879 = vunpack.c.h.b16 %v813
        %v880 = vunpack.c.l.b16 %v814
        %v881 = vunpack.c.h.b16 %v814
        %v882 = vunpack.c.l.b16 %v815
        %v883 = vunpack.c.h.b16 %v815
        %v884 = vunpack.c.l.b16 %v816
        %v885 = vunpack.c.h.b16 %v816
        %v886 = vunpack.c.l.b16 %v817
        %v887 = vunpack.c.h.b16 %v817
        %v888 = vunpack.c.l.b16 %v818
        %v889 = vunpack.c.h.b16 %v818
        %v890 = vunpack.c.l.b16 %v819
        %v891 = vunpack.c.h.b16 %v819
        %v892 = vunpack.c.l.b16 %v820
        %v893 = vunpack.c.h.b16 %v820
        %v894 = vunpack.c.l.b16 %v821
        %v895 = vunpack.c.h.b16 %v821
        %v896 = vunpack.c.l.b16 %v822
        %v897 = vunpack.c.h.b16 %v822
        %v898 = vunpack.c.l.b16 %v823
        %v899 = vunpack.c.h.b16 %v823
        %v900 = vunpack.c.l.b16 %v824
        %v901 = vunpack.c.h.b16 %v824
        %v902 = vunpack.c.l.b16 %v825
        %v903 = vunpack.c.h.b16 %v825
        %v904 = vunpack.c.l.b16 %v826
        %v905 = vunpack.c.h.b16 %v826
        %v906 = vunpack.c.l.b16 %v827
        %v907 = vunpack.c.h.b16 %v827
        %v908 = vunpack.c.l.b16 %v828
        %v909 = vunpack.c.h.b16 %v828
        %v910 = vunpack.c.l.b16 %v829
        %v911 = vunpack.c.h.b16 %v829
        %v912 = vunpack.c.l.b16 %v830
        %v913 = vunpack.c.h.b16 %v830
        %v914 = vunpack.c.l.b16 %v831
        %v915 = vunpack.c.h.b16 %v831
        %v916 = vunpack.c.l.b16 %v832
        %v917 = vunpack.c.h.b16 %v832
        %v918 = vunpack.c.l.b16 %v833
        %v919 = vunpack.c.h.b16 %v833
        %v920 = vunpack.c.l.b16 %v834
        %v921 = vunpack.c.h.b16 %v834
        %v922 = vunpack.c.l.b16 %v835
        %v923 = vunpack.c.h.b16 %v835
        %v924 = vunpack.c.l.b16 %v836
        %v925 = vunpack.c.h.b16 %v836
        %v926 = vunpack.c.l.b16 %v837
        %v927 = vunpack.c.h.b16 %v837
        %v928 = vunpack.c.l.b16 %v838
        %v929 = vunpack.c.h.b16 %v838
        %v930 = vunpack.c.l.b16 %v839
        %v931 = vunpack.c.h.b16 %v839
        %v932 = vunpack.c.l.b16 %v840
        %v933 = vunpack.c.h.b16 %v840
        %v934 = vunpack.c.l.b16 %v841
        %v935 = vunpack.c.h.b16 %v841
        %v936 = vunpack.c.l.b16 %v842
        %v937 = vunpack.c.h.b16 %v842
        %v938 = vunpack.c.l.b16 %v843
        %v939 = vunpack.c.h.b16 %v843
        %v940 = vpack.c.b16 %v878, %v876
        %v941 = vpack.c.b16 %v879, %v877
        %v942 = vpack.c.b16 %v882, %v880
        %v943 = vpack.c.b16 %v883, %v881
        %v944 = vpack.c.b16 %v886, %v884
        %v945 = vpack.c.b16 %v887, %v885
        %v946 = vpack.c.b16 %v890, %v888
        %v947 = vpack.c.b16 %v891, %v889
        %v948 = vpack.c.b16 %v894, %v892
        %v949 = vpack.c.b16 %v895, %v893
        %v950 = vpack.c.b16 %v898, %v896
        %v951 = vpack.c.b16 %v899, %v897
        %v952 = vpack.c.b16 %v902, %v900
        %v953 = vpack.c.b16 %v903, %v901
        %v954 = vpack.c.b16 %v906, %v904
        %v955 = vpack.c.b16 %v907, %v905
        %v956 = vpack.c.b16 %v910, %v908
        %v957 = vpack.c.b16 %v911, %v909
        %v958 = vpack.c.b16 %v914, %v912
        %v959 = vpack.c.b16 %v915, %v913
        %v960 = vpack.c.b16 %v918, %v916
        %v961 = vpack.c.b16 %v919, %v917
        %v962 = vpack.c.b16 %v922, %v920
        %v963 = vpack.c.b16 %v923, %v921
        %v964 = vpack.c.b16 %v926, %v924
        %v965 = vpack.c.b16 %v927, %v925
        %v966 = vpack.c.b16 %v930, %v928
        %v967 = vpack.c.b16 %v931, %v929
        %v968 = vpack.c.b16 %v934, %v932
        %v969 = vpack.c.b16 %v935, %v933
        %v970 = vpack.c.b16 %v938, %v936
        %v971 = vpack.c.b16 %v939, %v937
        %1004 = vmatprep.subr.bf16.mxu0 %v955
        %1005 = vmatpush1.bf16.msra.mxu0 %v954
        %1006 = vmatprep.subr.bf16.mxu0 %v953
        %1007 = vmatpush1.bf16.msra.mxu0 %v952
        %1008 = vmatprep.subr.bf16.mxu0 %v951
        %1009 = vmatpush1.bf16.msra.mxu0 %v950
        %1010 = vmatprep.subr.bf16.mxu0 %v949
        %1011 = vmatpush1.bf16.msra.mxu0 %v948
        %1012 = vmatprep.subr.bf16.mxu0 %v947
        %1013 = vmatpush1.bf16.msra.mxu0 %v946
        %1014 = vmatprep.subr.bf16.mxu0 %v945
        %1015 = vmatpush1.bf16.msra.mxu0 %v944
        %1016 = vmatprep.subr.bf16.mxu0 %v943
        %1017 = vmatpush1.bf16.msra.mxu0 %v942
        %1018 = vmatprep.subr.bf16.mxu0 %v941
        %1019 = vmatpush1.bf16.msra.mxu0 %v940
        %1020 = vmatprep.subr.bf16.mxu0 %v971
        %1021 = vmatpush2.bf16.msra.mxu0 %v970
        %1022 = vmatprep.subr.bf16.mxu0 %v969
        %1023 = vmatpush2.bf16.msra.mxu0 %v968
        %1024 = vmatprep.subr.bf16.mxu0 %v967
        %1025 = vmatpush2.bf16.msra.mxu0 %v966
        %1026 = vmatprep.subr.bf16.mxu0 %v965
        %1027 = vmatpush2.bf16.msra.mxu0 %v964
        %1028 = vmatprep.subr.bf16.mxu0 %v963
        %1029 = vmatpush2.bf16.msra.mxu0 %v962
        %1030 = vmatprep.subr.bf16.mxu0 %v961
        %1031 = vmatpush2.bf16.msra.mxu0 %v960
        %1032 = vmatprep.subr.bf16.mxu0 %v959
        %1033 = vmatpush2.bf16.msra.mxu0 %v958
        %1034 = vmatprep.subr.bf16.mxu0 %v957
        %1035 = vmatpush2.bf16.msra.mxu0 %v956
        %1036 = vmatprep.mubr.bf16.mxu0 %v337
        %1037 = vmatmul.mubr.bf16.gmra.mxu0 %v336
        %v1038 = vpop.f32.mrf.mxu0
        %v1039 = vadd.f32 0.0, %v1038
        %v1040 = vpop.f32.mrf.mxu0
        %v1041 = vadd.f32 0.0, %v1040
        %v1042 = vpop.f32.mrf.mxu0
        %v1043 = vpop.f32.mrf.mxu0
        %1044 = vdwg.mxu0
        %v1045 = vadd.f32 %v805, %v1039
        %v1046 = vadd.f32 %v807, %v1041
        %v1047 = vadd.f32 %v1045, %v330
        %v1048 = vadd.f32 %v1046, %v332
        %v1049 = vld [vmem:[%s3] sm:$0xff]
        %1051 = vset.pattern.permute.xlu0 0
        %1052 = vperm.xlu0 %1051, %v1049
        %v1053 = vpop.permute.xlu0 %1052
        %v1055 = vadd.f32 %v1047, %v1053
        %v1056 = vadd.f32 %v1048, %v1053
        %v1057 = vmax.f32 %v1055, 0.0
        %v1058 = vmax.f32 %v1056, 0.0
        %1059 = vst [vmem:[%s230] sm:$0xff] %v1057
        %1060 = vst [vmem:[%s230 + $0x8] sm:$0xff] %v1058
        %s1061 = sand.u32 %s132, 1
        %s1062 = scalar_lea.sflag [#allocation4], %s1061
        %s1063 = sand.u32 %s132, 1
        %s1064 = smul.addr %s1063, 16
        %s1065 = scalar_lea.vmem [#allocation5], %s1064
        // Predicated region
        $region41: #{tpu_custom_call.1} parent=35 // pred_check
          %p1066 = pneg %p142
        $region42: #{tpu_custom_call.1} parent=35 // pred_check_branch
          %1068 = sbr.rel (%p1066) target = $region44
        $region43: #{tpu_custom_call.1} parent=35 // pred_region
          %s1069 = smul.u32 2, %s24
          %s1071 = ssub.s32 256, 256
          %1072 = vsyncadd %s1062, %s1071
          %s1073 = smul.addr %s23, 2
          %s1074 = sadd.s32 %s1069, %s1073
          %s1075 = smul.addr %s1074, 128
          %s1076 = scalar_lea.hbm %s4, %s1075
          %s1078 = sshll.u32 %s1065, 4
          %s1079 = int_to_ptr.vmem [resolvable:$true] %s1078
          %1081 = dma.vmem_to_hbm [thread:$0]  %s1079, 256, %s1076, %s1062
        $region44: #{tpu_custom_call.1} parent=35 // pred_fallthru
          _
      $region36: #{tpu_custom_call.1} parent=5 // pred_fallthru
        _
      %p1082 = scmp.le.s32.totalorder 2, %s14
      // Predicated region
      $region45: #{tpu_custom_call.1} parent=5 // pred_check
        %p1083 = pneg %p1082
      $region46: #{tpu_custom_call.1} parent=5 // pred_check_branch
        %1085 = sbr.rel (%p1083) target = $region48
      $region47: #{tpu_custom_call.1} parent=5 // pred_region
        %s1086 = ssub.s32 %s14, 2
        // Predicated region
        $region49: #{tpu_custom_call.1} parent=47 // pred_check
          %p1087 = pneg %p148
        $region50: #{tpu_custom_call.1} parent=47 // pred_check_branch
          %1089 = sbr.rel (%p1087) target = $region52
        $region51: #{tpu_custom_call.1} parent=47 // pred_region
          %s1090 = sand.u32 %s133, 1
          %s1091 = scalar_lea.sflag [#allocation4], %s1090
          %s1092 = sand.u32 %s133, 1
          %s1093 = smul.addr %s1092, 16
          %s1094 = scalar_lea.vmem [#allocation5], %s1093
          %1095 = dma.done %s1091, 256
        $region52: #{tpu_custom_call.1} parent=47 // pred_fallthru
          _
      $region48: #{tpu_custom_call.1} parent=5 // pred_fallthru
        _
    $region6: #{tpu_custom_call.1} parent=1 // loop_footer
      %s18 = sadd.s32 1, %s14
    $region7: #{tpu_custom_call.1} parent=1 // loop_footer_branch
      %13 = sbr.rel target = $region3
    $region8: #{tpu_custom_call.1} parent=1 // loop_exit
      _
    %1096 = vsyncpa [#allocation3], 1
    %s1097 = scalar_lea.sflag [#allocation3], 1
    %1098 = vsyncpa %s1097, 1
    %1099 = vsyncpa [#allocation4], 1
    %s1100 = scalar_lea.sflag [#allocation4], 1
    %1101 = vsyncpa %s1100, 1

</llo_original>
